<compile_context>
chip_gen: v5e
topology: v5e:2x2
jax: 0.10.0
libtpu: 0.0.40
codegen_flags: <defaults>
</compile_context>

<pallas_src>
import functools
import math

import jax
import jax.numpy as jnp
from jax.experimental import pallas as pl
from jax.experimental.pallas import tpu as pltpu


# ----------------------------- Pallas kernels ------------------------------

def _embed_kernel(x_ref, w_ref, b_ref, pe_ref, o_ref):
    # Linear(F, H) + positional encoding, fused.
    x = x_ref[0].astype(jnp.bfloat16)                       # (S, F)
    o_ref[0] = (jnp.dot(x, w_ref[...], preferred_element_type=jnp.float32)
                + b_ref[...] + pe_ref[...])


def embed(x, w, b, pe):
    B, S, F = x.shape
    H = w.shape[1]
    return pl.pallas_call(
        _embed_kernel,
        grid=(B,),
        in_specs=[
            pl.BlockSpec((1, S, F), lambda i: (i, 0, 0)),
            pl.BlockSpec((F, H), lambda i: (0, 0)),
            pl.BlockSpec((1, H), lambda i: (0, 0)),
            pl.BlockSpec((S, H), lambda i: (0, 0)),
        ],
        out_specs=pl.BlockSpec((1, S, H), lambda i: (i, 0, 0)),
        out_shape=jax.ShapeDtypeStruct((B, S, H), jnp.float32),
        compiler_params=pltpu.CompilerParams(
            dimension_semantics=("parallel",)),
    )(x, w, b.reshape(1, H), pe)


def _attn_sublayer_kernel(h_ref, m_ref, g_ref, bln_ref, wqkv_ref, bqkv_ref,
                          wo_ref, bo_ref, o_ref, *, heads, scale):
    # Fused: pre-LN -> QKV (one matmul) -> per-head attention -> out proj
    #        -> residual add.  One batch element per grid step.
    x = h_ref[0]                                            # (S, H) f32
    mu = jnp.mean(x, axis=-1, keepdims=True)
    var = jnp.mean((x - mu) ** 2, axis=-1, keepdims=True)
    xn = (x - mu) * jax.lax.rsqrt(var + 1e-5) * g_ref[...] + bln_ref[...]

    qkv = (jnp.dot(xn.astype(jnp.bfloat16), wqkv_ref[...],
                   preferred_element_type=jnp.float32) + bqkv_ref[...])
    S, H = x.shape
    dk = H // heads

    # build additive key mask in-kernel: 0 (keep) / -1e9 (masked), shape (1,S)
    bias = jnp.where(m_ref[0] > 0, 0.0, -1e9).astype(jnp.float32)

    ctx_heads = []
    for hh in range(heads):                                 # static unroll
        qh = qkv[:, hh * dk:(hh + 1) * dk].astype(jnp.bfloat16)
        kh = qkv[:, H + hh * dk:H + (hh + 1) * dk].astype(jnp.bfloat16)
        vh = qkv[:, 2 * H + hh * dk:2 * H + (hh + 1) * dk].astype(jnp.bfloat16)
        s = (jnp.dot(qh, kh.T, preferred_element_type=jnp.float32) * scale
             + bias)                                        # (S, S)
        s = s - jnp.max(s, axis=-1, keepdims=True)
        p = jnp.exp(s)
        p = p * pl.reciprocal(jnp.sum(p, axis=-1, keepdims=True), approx=True)
        ctx_heads.append(jnp.dot(p.astype(jnp.bfloat16), vh,
                                 preferred_element_type=jnp.float32))
    ctx = jnp.concatenate(ctx_heads, axis=-1)               # (S, H)

    attn_out = (jnp.dot(ctx.astype(jnp.bfloat16), wo_ref[...],
                        preferred_element_type=jnp.float32) + bo_ref[...])
    o_ref[0] = x + attn_out                                 # residual fused


def attn_sublayer(h, mask3, g, bln, wqkv, bqkv, wo, bo, *, heads, scale):
    B, S, H = h.shape
    kern = functools.partial(_attn_sublayer_kernel, heads=heads, scale=scale)
    return pl.pallas_call(
        kern,
        grid=(B,),
        in_specs=[
            pl.BlockSpec((1, S, H), lambda i: (i, 0, 0)),
            pl.BlockSpec((1, 1, S), lambda i: (i, 0, 0)),
            pl.BlockSpec((1, H), lambda i: (0, 0)),
            pl.BlockSpec((1, H), lambda i: (0, 0)),
            pl.BlockSpec((H, 3 * H), lambda i: (0, 0)),
            pl.BlockSpec((1, 3 * H), lambda i: (0, 0)),
            pl.BlockSpec((H, H), lambda i: (0, 0)),
            pl.BlockSpec((1, H), lambda i: (0, 0)),
        ],
        out_specs=pl.BlockSpec((1, S, H), lambda i: (i, 0, 0)),
        out_shape=jax.ShapeDtypeStruct((B, S, H), jnp.float32),
        compiler_params=pltpu.CompilerParams(
            dimension_semantics=("parallel",)),
    )(h, mask3, g.reshape(1, H), bln.reshape(1, H),
      wqkv, bqkv.reshape(1, 3 * H), wo, bo.reshape(1, H))


def _ffn_sublayer_kernel(x_ref, g_ref, bln_ref, w1_ref, b1_ref, w2_ref,
                         b2_ref, o_ref):
    # Fused: pre-LN -> Linear(H,4H) -> GELU -> Linear(4H,H) -> residual add.
    x = x_ref[...]                                          # (tm, H) f32
    mu = jnp.mean(x, axis=-1, keepdims=True)
    var = jnp.mean((x - mu) ** 2, axis=-1, keepdims=True)
    xn = (x - mu) * jax.lax.rsqrt(var + 1e-5) * g_ref[...] + bln_ref[...]

    hmid = (jnp.dot(xn.astype(jnp.bfloat16), w1_ref[...],
                    preferred_element_type=jnp.float32) + b1_ref[...])
    # BERT-pytorch style GELU (tanh approximation); kept in f32 (v5e-safe).
    # TODO(synk): PyTorch nn.GELU default is the exact erf form (~1e-3 delta).
    hmid = 0.5 * hmid * (1.0 + jnp.tanh(
        math.sqrt(2.0 / math.pi) * (hmid + 0.044715 * hmid ** 3)))
    out = (jnp.dot(hmid.astype(jnp.bfloat16), w2_ref[...],
                   preferred_element_type=jnp.float32) + b2_ref[...])
    o_ref[...] = x + out                                    # residual fused


def ffn_sublayer(x2d, g, bln, w1, b1, w2, b2, *, block_m=512):
    M, H = x2d.shape
    F4 = w1.shape[1]
    tm = min(block_m, M)
    assert M % tm == 0
    return pl.pallas_call(
        _ffn_sublayer_kernel,
        grid=(M // tm,),
        in_specs=[
            pl.BlockSpec((tm, H), lambda i: (i, 0)),
            pl.BlockSpec((1, H), lambda i: (0, 0)),
            pl.BlockSpec((1, H), lambda i: (0, 0)),
            pl.BlockSpec((H, F4), lambda i: (0, 0)),
            pl.BlockSpec((1, F4), lambda i: (0, 0)),
            pl.BlockSpec((F4, H), lambda i: (0, 0)),
            pl.BlockSpec((1, H), lambda i: (0, 0)),
        ],
        out_specs=pl.BlockSpec((tm, H), lambda i: (i, 0)),
        out_shape=jax.ShapeDtypeStruct((M, H), jnp.float32),
        compiler_params=pltpu.CompilerParams(
            dimension_semantics=("parallel",)),
    )(x2d, g.reshape(1, H), bln.reshape(1, H),
      w1, b1.reshape(1, F4), w2, b2.reshape(1, H))


def _classify_kernel(x_ref, w_ref, b_ref, o_ref):
    # permute(0,2,1) + MaxPool1d(seq_len) + squeeze == max over axis=1,
    # then Linear(hidden, num_classes).
    pooled = jnp.max(x_ref[...], axis=1)                    # (B, H)
    o_ref[...] = (jnp.dot(pooled, w_ref[...],
                          preferred_element_type=jnp.float32) + b_ref[...])


def classify(x_bsh, w, b):
    B = x_bsh.shape[0]
    C = w.shape[1]
    # TODO(synk): for large real configs pad C (and H) to 128 lanes for
    # unmasked stores; at these small full-block shapes it is not needed.
    return pl.pallas_call(
        _classify_kernel,
        out_shape=jax.ShapeDtypeStruct((B, C), jnp.float32),
    )(x_bsh, w, b.reshape(1, C))


# ----------------------------- model (glue) --------------------------------

def sinusoidal_pe(seq_len, hidden):
    pos = jnp.arange(seq_len, dtype=jnp.float32)[:, None]
    i = jnp.arange(hidden, dtype=jnp.float32)[None, :]
    angle = pos / jnp.power(10000.0, (2.0 * (i // 2)) / hidden)
    pe = jnp.where(i % 2 == 0, jnp.sin(angle), jnp.cos(angle))
    return pe.astype(jnp.float32)


def init_params(key, num_features, hidden, heads, n_layers, seq_len,
                num_classes):
    def nrm(k, shape, scale=0.02, dtype=jnp.bfloat16):
        return (scale * jax.random.normal(k, shape)).astype(dtype)

    keys = iter(jax.random.split(key, 128))
    params = dict(hidden=hidden, heads=heads)
    params["emb_w"] = nrm(next(keys), (num_features, hidden))
    params["emb_b"] = jnp.zeros((hidden,), jnp.float32)
    params["pos_enc"] = sinusoidal_pe(seq_len, hidden)
    layers = []
    for _ in range(n_layers):
        wq = nrm(next(keys), (hidden, hidden))
        wk = nrm(next(keys), (hidden, hidden))
        wv = nrm(next(keys), (hidden, hidden))
        lp = {
            "ln1_g": jnp.ones((hidden,), jnp.float32),
            "ln1_b": jnp.zeros((hidden,), jnp.float32),
            "wqkv": jnp.concatenate([wq, wk, wv], axis=1),      # (H, 3H) bf16
            "bqkv": jnp.zeros((3 * hidden,), jnp.float32),
            "wo": nrm(next(keys), (hidden, hidden)),
            "bo": jnp.zeros((hidden,), jnp.float32),
            "ln2_g": jnp.ones((hidden,), jnp.float32),
            "ln2_b": jnp.zeros((hidden,), jnp.float32),
            "w1": nrm(next(keys), (hidden, 4 * hidden)),
            "b1": jnp.zeros((4 * hidden,), jnp.float32),
            "w2": nrm(next(keys), (4 * hidden, hidden)),
            "b2": jnp.zeros((hidden,), jnp.float32),
        }
        layers.append(lp)
    params["layers"] = layers
    params["cls_w"] = nrm(next(keys), (hidden, num_classes),
                          dtype=jnp.float32)
    params["cls_b"] = jnp.zeros((num_classes,), jnp.float32)
    return params


def tvtsbert_forward(params, x, mask):
    B, S, _ = x.shape
    H = params["hidden"]
    heads = params["heads"]
    dk = H // heads

    # embedding: Linear(F, H) + positional encoding (dropout = identity)
    h = embed(x, params["emb_w"], params["emb_b"], params["pos_enc"])

    # raw key mask, (B, 1, S); -1e9 bias is built inside the attention kernel
    mask3 = mask.reshape(B, 1, S).astype(jnp.int32)

    for lp in params["layers"]:
        h = attn_sublayer(h, mask3, lp["ln1_g"], lp["ln1_b"],
                          lp["wqkv"], lp["bqkv"], lp["wo"], lp["bo"],
                          heads=heads, scale=1.0 / math.sqrt(dk))
        h2 = ffn_sublayer(h.reshape(B * S, H), lp["ln2_g"], lp["ln2_b"],
                          lp["w1"], lp["b1"], lp["w2"], lp["b2"])
        h = h2.reshape(B, S, H)
    return h                                                # (B, S, H)


def tvtsbert_classification_forward(params, x, mask):
    h = tvtsbert_forward(params, x, mask)                   # (B, S, H)
    # MulticlassClassification head (word_len == 1 -> global max over seq)
    return classify(h, params["cls_w"], params["cls_b"])    # (B, num_classes)


# --------------------------------- main -------------------------------------

if __name__ == "__main__":
    # small shapes consistent with the module
    batch, seq_len, num_features = 2, 8, 4
    hidden, heads, n_layers = 32, 4, 2
    num_classes, word_len = 3, 1      # pooling_len = seq_len / word_len = 8
    # TODO(synk): exact TVTSBERT source was not provided; a standard BERT-style
    # encoder (as used by TVTS/SITS-BERT) is implemented above.

    key = jax.random.PRNGKey(0)
    kx, kp = jax.random.split(key)
    x = jax.random.normal(kx, (batch, seq_len, num_features), jnp.float32)
    mask = jnp.ones((batch, seq_len), jnp.int32)
    params = init_params(kp, num_features, hidden, heads, n_layers, seq_len,
                         num_classes)

    out = tvtsbert_classification_forward(params, x, mask)
    out = jax.block_until_ready(out)
    assert out.shape == (batch, num_classes)
    print("KERNEL_OK")
</pallas_src>

<mosaic_0001>
module attributes {stable_mosaic.version = 11 : i64} {
  func.func @_embed_kernel(%arg0: i32, %arg1: memref<1x8x4xf32, #tpu.memory_space<vmem>>, %arg2: memref<4x32xbf16, #tpu.memory_space<vmem>>, %arg3: memref<1x32xf32, #tpu.memory_space<vmem>>, %arg4: memref<8x32xf32, #tpu.memory_space<vmem>>, %arg5: memref<1x8x32xf32, #tpu.memory_space<vmem>>) attributes {dimension_semantics = [#tpu.dimension_semantics<parallel>], iteration_bounds = array<i64: 2>, scalar_prefetch = 0 : i64, scratch_operands = 0 : i64, tpu.core_type = #tpu.core_type<tc>, window_params = [{transform_indices = @transform_0, window_bounds = array<i64: 1, 8, 4>}, {pipeline_mode = #tpu.pipeline_mode<synchronous>, transform_indices = @transform_1, window_bounds = array<i64: 4, 32>}, {pipeline_mode = #tpu.pipeline_mode<synchronous>, transform_indices = @transform_2, window_bounds = array<i64: 1, 32>}, {pipeline_mode = #tpu.pipeline_mode<synchronous>, transform_indices = @transform_3, window_bounds = array<i64: 8, 32>}, {transform_indices = @transform_4, window_bounds = array<i64: 1, 8, 32>}]} {
    %c0 = arith.constant 0 : index
    %c0_0 = arith.constant 0 : index
    %c0_1 = arith.constant 0 : index
    %0 = vector.load %arg1[%c0, %c0_0, %c0_1] : memref<1x8x4xf32, #tpu.memory_space<vmem>>, vector<1x8x4xf32>
    %1 = vector.shape_cast %0 : vector<1x8x4xf32> to vector<8x4xf32>
    %2 = arith.truncf %1 : vector<8x4xf32> to vector<8x4xbf16>
    %c0_2 = arith.constant 0 : index
    %c0_3 = arith.constant 0 : index
    %3 = vector.load %arg2[%c0_2, %c0_3] : memref<4x32xbf16, #tpu.memory_space<vmem>>, vector<4x32xbf16>
    %cst = arith.constant dense<0.000000e+00> : vector<8x32xf32>
    %4 = tpu.matmul %2, %3, %cst {dimension_numbers = #tpu.dot_dimension_numbers<[1], [0], [0], [1], [0, 0, 1, 1], [], []>} : vector<8x4xbf16>, vector<4x32xbf16>, vector<8x32xf32> -> vector<8x32xf32>
    %c0_4 = arith.constant 0 : index
    %c0_5 = arith.constant 0 : index
    %5 = vector.load %arg3[%c0_4, %c0_5] : memref<1x32xf32, #tpu.memory_space<vmem>>, vector<1x32xf32>
    %6 = vector.broadcast %5 : vector<1x32xf32> to vector<8x32xf32>
    %7 = arith.addf %4, %6 : vector<8x32xf32>
    %c0_6 = arith.constant 0 : index
    %c0_7 = arith.constant 0 : index
    %8 = vector.load %arg4[%c0_6, %c0_7] : memref<8x32xf32, #tpu.memory_space<vmem>>, vector<8x32xf32>
    %9 = arith.addf %7, %8 : vector<8x32xf32>
    %c0_8 = arith.constant 0 : index
    %c0_9 = arith.constant 0 : index
    %c0_10 = arith.constant 0 : index
    %10 = vector.load %arg5[%c0_8, %c0_9, %c0_10] : memref<1x8x32xf32, #tpu.memory_space<vmem>>, vector<1x8x32xf32>
    %11 = vector.shape_cast %10 : vector<1x8x32xf32> to vector<8x32xf32>
    %12 = vector.shape_cast %9 : vector<8x32xf32> to vector<1x8x32xf32>
    tpu.vector_store %arg5[%c0_8, %c0_9, %c0_10], %12 {strides = array<i32>} : memref<1x8x32xf32, #tpu.memory_space<vmem>>, vector<1x8x32xf32>,
    return
  }
  func.func @transform_0(%arg0: i32) -> (i32, i32, i32) {
    %c0_i32 = arith.constant 0 : i32
    %c0_i32_0 = arith.constant 0 : i32
    %c0_i32_1 = arith.constant 0 : i32
    return %arg0, %c0_i32, %c0_i32_0 : i32, i32, i32
  }
  func.func @transform_1(%arg0: i32) -> (i32, i32) {
    %c0_i32 = arith.constant 0 : i32
    %c0_i32_0 = arith.constant 0 : i32
    %c0_i32_1 = arith.constant 0 : i32
    return %c0_i32, %c0_i32_0 : i32, i32
  }
  func.func @transform_2(%arg0: i32) -> (i32, i32) {
    %c0_i32 = arith.constant 0 : i32
    %c0_i32_0 = arith.constant 0 : i32
    %c0_i32_1 = arith.constant 0 : i32
    return %c0_i32, %c0_i32_0 : i32, i32
  }
  func.func @transform_3(%arg0: i32) -> (i32, i32) {
    %c0_i32 = arith.constant 0 : i32
    %c0_i32_0 = arith.constant 0 : i32
    %c0_i32_1 = arith.constant 0 : i32
    return %c0_i32, %c0_i32_0 : i32, i32
  }
  func.func @transform_4(%arg0: i32) -> (i32, i32, i32) {
    %c0_i32 = arith.constant 0 : i32
    %c0_i32_0 = arith.constant 0 : i32
    %c0_i32_1 = arith.constant 0 : i32
    return %arg0, %c0_i32, %c0_i32_0 : i32, i32, i32
  }
}

</mosaic_0001>

<llo_original>
// kernel: tpu_custom_call.1
$region0: #{tpu_custom_call.1}
  #allocation0 [shape = 'u32[]', space=smem, size = 0x4, offset = 0x4, fixed_abs, tag = 'smem constant byte address 0x4 - core index']
  #allocation1 [shape = 'u32[72,128]{1,0:T(1,128)}', space=vmem, size = 0x9000, scoped, tag = 'internal scratch']
  %s0 = inlined_call_operand.vmem [shape: f32[2,8,4], index: 0, kind: input, shape index: {}]
  %s1 = inlined_call_operand.vmem [shape: bf16[4,32], index: 1, kind: input, shape index: {}]
  %s2 = inlined_call_operand.vmem [shape: f32[1,32], index: 2, kind: input, shape index: {}]
  %s3 = inlined_call_operand.vmem [shape: f32[8,32], index: 3, kind: input, shape index: {}]
  %s4 = inlined_call_operand.hbm [shape: f32[2,8,32], index: 4, kind: output, shape index: {}]
  %s5 = sld [smem:[#allocation0]]
  $region49: #{tpu_custom_call.1} parent=0
    _
  %s7 = ssub.s32 1, %s5
  %s8 = scalar_select 0, %s7, %s5
  $region1: #{tpu_custom_call.1} parent=0
    #allocation2 [shape = 'u8[8192]{0}', space=vmem, size = 0x2000, scoped, tag = 'output window, operand 0']
    #allocation3 [shape = 's32[2]{0}', space=sflag, size = 0x8, scoped, tag = 'scoped memory for tpu_custom_call.1']
    %9 = vsyncpa [#allocation3], 0
    %s10 = scalar_lea.sflag [#allocation3], 1
    %11 = vsyncpa %s10, 0
    loop: start=0, step=1, limit=4
    $region2: #{tpu_custom_call.1} parent=1 // loop_pre_header
      _
    $region3: #{tpu_custom_call.1} parent=1 // loop_header
      %s13 = sphi 0, %s17
      %p14 = scmp.ge.s32.totalorder %s13, 4
      %s23 = sphi 0, %s25
      %s26 = sphi 0, %s23
      %s27 = sphi 0, %s26
      %s43 = sphi 0, %s27
      %s47 = sphi 0, %s47
      %s49 = sphi 0, %s47
      %s50 = sphi 0, %s49
      %s64 = sphi 0, %s50
      %s68 = sphi 0, %s68
      %s70 = sphi 0, %s68
      %s71 = sphi 0, %s70
      %s85 = sphi 0, %s71
      %s89 = sphi 0, %s89
      %s91 = sphi 0, %s89
      %s92 = sphi 0, %s91
      %s106 = sphi 0, %s92
      %s112 = sphi 0, %s114
      %s115 = sphi 0, %s112
      %s116 = sphi 0, %s115
      %s132 = sphi 0, %s116
    $region4: #{tpu_custom_call.1} parent=1 // loop_header_branch
      %16 = sbr.rel (%p14) target = $region8
    $region5: #{tpu_custom_call.1} parent=1 // loop_body
      %s18 = ssub.s32 %s13, 1
      %s19 = ssub.s32 %s13, 2
      %s20 = sadd.s32 %s13, 1
      %s21 = ssub.s32 %s13, %s20
      %p22 = scmp.eq.s32.totalorder %s21, 0
      %s24 = sadd.s32 %s23, 1
      %s25 = scalar_select %p22, %s23, %s24
      %p28 = pneg %p22
      %p29 = scmp.eq.s32.totalorder %s13, 1
      %p30 = por %p28, %p29
      %p31 = scmp.ne.s32.totalorder %s23, %s26
      %p32 = scmp.eq.s32.totalorder %s13, 0
      %p33 = por %p31, %p32
      %p34 = scmp.ne.s32.totalorder %s23, %s26
      %p35 = scmp.eq.s32.totalorder %s18, 1
      %p36 = por %p34, %p35
      %p37 = scmp.ne.s32.totalorder %s26, %s27
      %p38 = scmp.eq.s32.totalorder %s18, 0
      %p39 = por %p37, %p38
      %p40 = scmp.ne.s32.totalorder %s26, %s27
      %p41 = scmp.eq.s32.totalorder %s19, 1
      %p42 = por %p40, %p41
      %p44 = scmp.ne.s32.totalorder %s27, %s43
      %p45 = scmp.eq.s32.totalorder %s19, 0
      %p46 = por %p44, %p45
      %s48 = sadd.s32 %s47, 1
      %p51 = scmp.eq.s32.totalorder %s13, 1
      %p52 = scmp.ne.s32.totalorder %s47, %s49
      %p53 = scmp.eq.s32.totalorder %s13, 0
      %p54 = por %p52, %p53
      %p55 = scmp.ne.s32.totalorder %s47, %s49
      %p56 = scmp.eq.s32.totalorder %s18, 1
      %p57 = por %p55, %p56
      %p58 = scmp.ne.s32.totalorder %s49, %s50
      %p59 = scmp.eq.s32.totalorder %s18, 0
      %p60 = por %p58, %p59
      %p61 = scmp.ne.s32.totalorder %s49, %s50
      %p62 = scmp.eq.s32.totalorder %s19, 1
      %p63 = por %p61, %p62
      %p65 = scmp.ne.s32.totalorder %s50, %s64
      %p66 = scmp.eq.s32.totalorder %s19, 0
      %p67 = por %p65, %p66
      %s69 = sadd.s32 %s68, 1
      %p72 = scmp.eq.s32.totalorder %s13, 1
      %p73 = scmp.ne.s32.totalorder %s68, %s70
      %p74 = scmp.eq.s32.totalorder %s13, 0
      %p75 = por %p73, %p74
      %p76 = scmp.ne.s32.totalorder %s68, %s70
      %p77 = scmp.eq.s32.totalorder %s18, 1
      %p78 = por %p76, %p77
      %p79 = scmp.ne.s32.totalorder %s70, %s71
      %p80 = scmp.eq.s32.totalorder %s18, 0
      %p81 = por %p79, %p80
      %p82 = scmp.ne.s32.totalorder %s70, %s71
      %p83 = scmp.eq.s32.totalorder %s19, 1
      %p84 = por %p82, %p83
      %p86 = scmp.ne.s32.totalorder %s71, %s85
      %p87 = scmp.eq.s32.totalorder %s19, 0
      %p88 = por %p86, %p87
      %s90 = sadd.s32 %s89, 1
      %p93 = scmp.eq.s32.totalorder %s13, 1
      %p94 = scmp.ne.s32.totalorder %s89, %s91
      %p95 = scmp.eq.s32.totalorder %s13, 0
      %p96 = por %p94, %p95
      %p97 = scmp.ne.s32.totalorder %s89, %s91
      %p98 = scmp.eq.s32.totalorder %s18, 1
      %p99 = por %p97, %p98
      %p100 = scmp.ne.s32.totalorder %s91, %s92
      %p101 = scmp.eq.s32.totalorder %s18, 0
      %p102 = por %p100, %p101
      %p103 = scmp.ne.s32.totalorder %s91, %s92
      %p104 = scmp.eq.s32.totalorder %s19, 1
      %p105 = por %p103, %p104
      %p107 = scmp.ne.s32.totalorder %s92, %s106
      %p108 = scmp.eq.s32.totalorder %s19, 0
      %p109 = por %p107, %p108
      %s110 = ssub.s32 %s13, %s20
      %p111 = scmp.eq.s32.totalorder %s110, 0
      %s113 = sadd.s32 %s112, 1
      %s114 = scalar_select %p111, %s112, %s113
      %p117 = pneg %p111
      %p118 = scmp.eq.s32.totalorder %s13, 1
      %p119 = por %p117, %p118
      %p120 = scmp.ne.s32.totalorder %s112, %s115
      %p121 = scmp.eq.s32.totalorder %s13, 0
      %p122 = por %p120, %p121
      %p123 = scmp.ne.s32.totalorder %s112, %s115
      %p124 = scmp.eq.s32.totalorder %s18, 1
      %p125 = por %p123, %p124
      %p126 = scmp.ne.s32.totalorder %s115, %s116
      %p127 = scmp.eq.s32.totalorder %s18, 0
      %p128 = por %p126, %p127
      %p129 = scmp.ne.s32.totalorder %s115, %s116
      %p130 = scmp.eq.s32.totalorder %s19, 1
      %p131 = por %p129, %p130
      %p133 = scmp.ne.s32.totalorder %s116, %s132
      %p134 = scmp.eq.s32.totalorder %s19, 0
      %p135 = por %p133, %p134
      %p136 = scmp.le.s32.totalorder 1, %s13
      %p137 = scmp.lt.s32.totalorder %s13, 3
      %p138 = pnand %p136, %p137
      %p139 = pneg %p138
      // Predicated region
      $region9: #{tpu_custom_call.1} parent=5 // pred_check
        _
      $region10: #{tpu_custom_call.1} parent=5 // pred_check_branch
        %141 = sbr.rel (%p138) target = $region12
      $region11: #{tpu_custom_call.1} parent=5 // pred_region
        %s142 = ssub.s32 %s13, 1
        // Predicated region
        $region13: #{tpu_custom_call.1} parent=11 // pred_check
          %p143 = pneg %p60
        $region14: #{tpu_custom_call.1} parent=11 // pred_check_branch
          %145 = sbr.rel (%p143) target = $region16
        $region15: #{tpu_custom_call.1} parent=11 // pred_region
          _
        $region16: #{tpu_custom_call.1} parent=11 // pred_fallthru
          _
        // Predicated region
        $region17: #{tpu_custom_call.1} parent=11 // pred_check
          %p146 = pneg %p81
        $region18: #{tpu_custom_call.1} parent=11 // pred_check_branch
          %148 = sbr.rel (%p146) target = $region20
        $region19: #{tpu_custom_call.1} parent=11 // pred_region
          _
        $region20: #{tpu_custom_call.1} parent=11 // pred_fallthru
          _
        // Predicated region
        $region21: #{tpu_custom_call.1} parent=11 // pred_check
          %p149 = pneg %p102
        $region22: #{tpu_custom_call.1} parent=11 // pred_check_branch
          %151 = sbr.rel (%p149) target = $region24
        $region23: #{tpu_custom_call.1} parent=11 // pred_region
          _
        $region24: #{tpu_custom_call.1} parent=11 // pred_fallthru
          _
      $region12: #{tpu_custom_call.1} parent=5 // pred_fallthru
        _
      %p152 = scmp.lt.s32.totalorder %s13, 2
      // Predicated region
      $region25: #{tpu_custom_call.1} parent=5 // pred_check
        %p153 = pneg %p152
      $region26: #{tpu_custom_call.1} parent=5 // pred_check_branch
        %155 = sbr.rel (%p153) target = $region28
      $region27: #{tpu_custom_call.1} parent=5 // pred_region
        // Predicated region
        $region29: #{tpu_custom_call.1} parent=27 // pred_check
          %p156 = pneg %p33
        $region30: #{tpu_custom_call.1} parent=27 // pred_check_branch
          %158 = sbr.rel (%p156) target = $region32
        $region31: #{tpu_custom_call.1} parent=27 // pred_region
          %p159 = scmp.lt.s32.totalorder %s13, 1
          %s160 = scalar_select %p159, %s13, 1
          %s161 = smul.addr %s160, 8
          %s162 = scalar_lea.vmem %s0, %s161
        $region32: #{tpu_custom_call.1} parent=27 // pred_fallthru
          _
      $region28: #{tpu_custom_call.1} parent=5 // pred_fallthru
        _
      %p163 = scmp.le.s32.totalorder 1, %s13
      %p164 = scmp.lt.s32.totalorder %s13, 3
      %p165 = pnand %p163, %p164
      %p166 = pneg %p165
      // Predicated region
      $region33: #{tpu_custom_call.1} parent=5 // pred_check
        _
      $region34: #{tpu_custom_call.1} parent=5 // pred_check_branch
        %168 = sbr.rel (%p165) target = $region36
      $region35: #{tpu_custom_call.1} parent=5 // pred_region
        %s169 = ssub.s32 %s13, 1
        %p170 = scmp.lt.s32.totalorder %s18, 1
        %s171 = scalar_select %p170, %s18, 1
        %s172 = smul.addr %s171, 8
        %s173 = scalar_lea.vmem %s0, %s172
        %p174 = pneg %p39
        %p175 = pneg %p36
        %p176 = pneg %p60
        %p177 = pneg %p57
        %p178 = pneg %p81
        %p179 = pneg %p78
        %p180 = pneg %p102
        %p181 = pneg %p99
        %p182 = pneg %p128
        %p183 = pneg %p125
        %s184 = sand.u32 %s115, 1
        %s185 = scalar_lea.sflag [#allocation3], %s184
        %s186 = sand.u32 %s115, 1
        %s187 = smul.addr %s186, 8
        %s188 = scalar_lea.vmem [#allocation2], %s187
        %p189 = scmp.lt.s32.totalorder %s18, 1
        %s190 = scalar_select %p189, %s18, 1
        %s191 = smul.addr %s190, 8
        %s192 = scalar_lea.vmem %s0, %s191
        %v194 = vld [vmem:[%s192] sm:$0xff]
        %v195 = vpack.c.bf16 %v194, %v194
        %v196 = vld [vmem:[%s1] sm:$0x3]
        %v197 = vld [vmem:[%s2] sm:$0x1]
        %v199 = vperm.slane %v197, 0
        %vm201 = vcmask 31744
        %v203 = vsel %vm201, %v195, 0
        %vm205 = vcmask 1041408
        %v207 = vsel %vm205, %v196, 0
        %209 = vmatpush.bf16.msra.mxu0 0
        %210 = vmatpush.bf16.msra.mxu0 0
        %211 = vmatpush.bf16.msra.mxu0 0
        %212 = vmatpush.bf16.msra.mxu0 0
        %213 = vmatpush.bf16.msra.mxu0 0
        %214 = vmatpush.bf16.msra.mxu0 0
        %215 = vmatpush.bf16.msra.mxu0 0
        %216 = vmatpush.bf16.msra.mxu0 %v207
        %217 = vmatmul.bf16.gmra.mxu0 %v203
        %v218 = vpop.f32.mrf.mxu0
        %v219 = vadd.f32 %v199, %v218
        %v220 = vpop.f32.mrf.mxu0
        %221 = vdwg.mxu0
        %v222 = vld [vmem:[%s3] sm:$0xff]
        %v223 = vadd.f32 %v219, %v222
        %vm224 = vcmask 261120
        %225 = vst.msk [vmem:[%s188] sm:$0xff] %vm224, %v223
        %s226 = sand.u32 %s115, 1
        %s227 = scalar_lea.sflag [#allocation3], %s226
        %s228 = sand.u32 %s115, 1
        %s229 = smul.addr %s228, 8
        %s230 = scalar_lea.vmem [#allocation2], %s229
        // Predicated region
        $region37: #{tpu_custom_call.1} parent=35 // pred_check
          %p231 = pneg %p125
        $region38: #{tpu_custom_call.1} parent=35 // pred_check_branch
          %233 = sbr.rel (%p231) target = $region40
        $region39: #{tpu_custom_call.1} parent=35 // pred_region
          %235 = vsyncadd %s227, 0
          %s236 = smul.addr %s18, 8
          %s237 = scalar_lea.hbm %s4, %s236
          %s239 = sshll.u32 %s230, 4
          %s240 = int_to_ptr.vmem [resolvable:$true] %s239
          %s241 = sshll.u32 %s237, 4
          %s242 = int_to_ptr.hbm [resolvable:$true] %s241
          %244 = dma.vmem_to_hbm [thread:$0]  %s240, 128, %s242, %s227
        $region40: #{tpu_custom_call.1} parent=35 // pred_fallthru
          _
      $region36: #{tpu_custom_call.1} parent=5 // pred_fallthru
        _
      %p245 = scmp.le.s32.totalorder 2, %s13
      // Predicated region
      $region41: #{tpu_custom_call.1} parent=5 // pred_check
        %p246 = pneg %p245
      $region42: #{tpu_custom_call.1} parent=5 // pred_check_branch
        %248 = sbr.rel (%p246) target = $region44
      $region43: #{tpu_custom_call.1} parent=5 // pred_region
        %s249 = ssub.s32 %s13, 2
        // Predicated region
        $region45: #{tpu_custom_call.1} parent=43 // pred_check
          %p250 = pneg %p131
        $region46: #{tpu_custom_call.1} parent=43 // pred_check_branch
          %252 = sbr.rel (%p250) target = $region48
        $region47: #{tpu_custom_call.1} parent=43 // pred_region
          %s253 = sand.u32 %s116, 1
          %s254 = scalar_lea.sflag [#allocation3], %s253
          %s255 = sand.u32 %s116, 1
          %s256 = smul.addr %s255, 8
          %s257 = scalar_lea.vmem [#allocation2], %s256
          %259 = dma.done %s254, 128
        $region48: #{tpu_custom_call.1} parent=43 // pred_fallthru
          _
      $region44: #{tpu_custom_call.1} parent=5 // pred_fallthru
        _
    $region6: #{tpu_custom_call.1} parent=1 // loop_footer
      %s17 = sadd.s32 1, %s13
    $region7: #{tpu_custom_call.1} parent=1 // loop_footer_branch
      %12 = sbr.rel target = $region3
    $region8: #{tpu_custom_call.1} parent=1 // loop_exit
      _
    %260 = vsyncpa [#allocation3], 1
    %s261 = scalar_lea.sflag [#allocation3], 1
    %262 = vsyncpa %s261, 1

</llo_original>
